<compile_context>
chip_gen: v5e
topology: v5e:2x2
jax: 0.10.0
libtpu: 0.0.40
codegen_flags: <defaults>
</compile_context>

<pallas_src>
import jax
import jax.numpy as jnp
from jax.experimental import pallas as pl
from jax.experimental.pallas import tpu as pltpu


LANES = 128
_SUBLANES = 8
_MAX_TILE_ROWS = 2048      # (2048, 128) f32 tile = 1 MiB; 2 inputs x 2 bufs = 4 MiB
_NUM_CORES = 2             # v7x has 2 TCs; harmless (sequential) on v5e/v6e


def _iou_kernel(n_ref, x_ref, t_ref, out_i_ref, out_t_ref, acc_i_ref, acc_t_ref):
    """Accumulate elementwise partials per tile; reduce + emit once per core.

    n_ref     : SMEM (1,) int32  -- true (unpadded) element count
    x_ref     : (tile_rows, 128) logits tile (native dtype, cast in-kernel)
    t_ref     : (tile_rows, 128) targets tile
    out_*_ref : (1, 8, 128) f32  -- per-core partial sums broadcast over the block
    acc_*_ref : VMEM (tile_rows, 128) f32 vector accumulators
    """
    c = pl.program_id(0)                # core-split axis ("parallel")
    i = pl.program_id(1)                # sequential reduction axis ("arbitrary")
    n_inner = pl.num_programs(1)
    tile_rows, lanes = x_ref.shape
    tile_elems = tile_rows * lanes      # NOTE: flat indices assumed to fit int32

    @pl.when(i == 0)
    def _init():
        acc_i_ref[...] = jnp.zeros_like(acc_i_ref)
        acc_t_ref[...] = jnp.zeros_like(acc_t_ref)

    # Cast after the (possibly bf16) load; sigmoid's exp/recip run on the EUP.
    x = jax.nn.sigmoid(x_ref[...].astype(jnp.float32))
    t = t_ref[...].astype(jnp.float32)
    inter = x * t
    tot = x + t

    blk = c * n_inner + i               # logical tile index over the flat array
    start = blk * tile_elems            # first flat element covered by this tile
    n_valid = n_ref[0]
    is_full = (start + tile_elems) <= n_valid

    @pl.when(is_full)
    def _fast():                        # hot path: pure VPU, no masking
        acc_i_ref[...] += inter
        acc_t_ref[...] += tot

    @pl.when(jnp.logical_not(is_full))
    def _masked():                      # ragged tail / clamped extra tiles
        row = jax.lax.broadcasted_iota(jnp.int32, (tile_rows, lanes), 0)
        lane = jax.lax.broadcasted_iota(jnp.int32, (tile_rows, lanes), 1)
        idx = start + row * lanes + lane
        m = idx < n_valid
        acc_i_ref[...] += jnp.where(m, inter, 0.0)
        acc_t_ref[...] += jnp.where(m, tot, 0.0)

    @pl.when(i == n_inner - 1)
    def _finalize():                    # single cross-lane reduction per core
        out_i_ref[...] = jnp.broadcast_to(jnp.sum(acc_i_ref[...]), out_i_ref.shape)
        out_t_ref[...] = jnp.broadcast_to(jnp.sum(acc_t_ref[...]), out_t_ref.shape)


def iou_loss(inputs, targets, smooth=1.0):
    """Pallas TPU implementation of IOU_loss.forward (any shape, any smooth)."""
    x = jnp.reshape(inputs, (-1,))      # keep native dtype (bf16 halves HBM bytes)
    t = jnp.reshape(targets, (-1,))
    n = x.shape[0]

    # Pad only when numel isn't already a multiple of 8*128 (copy-free for
    # typical NCHW segmentation shapes).  Pad value is irrelevant: the kernel
    # masks by the true element count.
    pad = (-n) % (_SUBLANES * LANES)
    if pad:
        x = jnp.pad(x, (0, pad))
        t = jnp.pad(t, (0, pad))
    rows = (n + pad) // LANES           # multiple of 8

    tile_rows = min(_MAX_TILE_ROWS, rows)
    num_blocks = pl.cdiv(rows, tile_rows)
    bpc = pl.cdiv(num_blocks, _NUM_CORES)   # row-tiles per core
    last_block = num_blocks - 1

    def in_map(c, i, n_ref):
        # Clamp so cores with no remaining work re-read a valid tile; the
        # kernel masks those contributions to exactly zero.
        return (jnp.minimum(c * bpc + i, last_block), 0)

    def out_map(c, i, n_ref):
        return (c, 0, 0)

    x2 = x.reshape(rows, LANES)
    t2 = t.reshape(rows, LANES)
    n_arr = jnp.array([n], dtype=jnp.int32)

    part_i, part_t = pl.pallas_call(
        _iou_kernel,
        out_shape=(
            jax.ShapeDtypeStruct((_NUM_CORES, _SUBLANES, LANES), jnp.float32),
            jax.ShapeDtypeStruct((_NUM_CORES, _SUBLANES, LANES), jnp.float32),
        ),
        grid_spec=pltpu.PrefetchScalarGridSpec(
            num_scalar_prefetch=1,
            grid=(_NUM_CORES, bpc),
            in_specs=[
                pl.BlockSpec((tile_rows, LANES), in_map),
                pl.BlockSpec((tile_rows, LANES), in_map),
            ],
            out_specs=[
                pl.BlockSpec((1, _SUBLANES, LANES), out_map),
                pl.BlockSpec((1, _SUBLANES, LANES), out_map),
            ],
            scratch_shapes=[
                pltpu.VMEM((tile_rows, LANES), jnp.float32),
                pltpu.VMEM((tile_rows, LANES), jnp.float32),
            ],
        ),
        compiler_params=pltpu.CompilerParams(
            dimension_semantics=("parallel", "arbitrary"),
        ),
    )(n_arr, x2, t2)

    intersection = jnp.sum(part_i[:, 0, 0])
    total = jnp.sum(part_t[:, 0, 0])
    union = total - intersection
    iou = (intersection + smooth) / (union + smooth)
    return (1.0 - iou).astype(jnp.float32)


def _iou_loss_ref(inputs, targets, smooth=1.0):
    x = jax.nn.sigmoid(inputs.astype(jnp.float32)).reshape(-1)
    t = targets.astype(jnp.float32).reshape(-1)
    intersection = jnp.sum(x * t)
    total = jnp.sum(x + t)
    union = total - intersection
    return 1.0 - (intersection + smooth) / (union + smooth)


if __name__ == "__main__":
    key = jax.random.PRNGKey(0)
    k1, k2, k3, k4 = jax.random.split(key, 4)

    # Segmentation-style shapes: batch=2, channels=4, spatial=16x16 (aligned).
    inputs = jax.random.normal(k1, (2, 4, 16, 16), dtype=jnp.float32)   # logits
    targets = (jax.random.uniform(k2, (2, 4, 16, 16)) > 0.5).astype(jnp.float32)

    loss = jax.block_until_ready(iou_loss(inputs, targets))
    ref = jax.block_until_ready(_iou_loss_ref(inputs, targets))
    assert jnp.allclose(loss, ref, rtol=1e-5, atol=1e-5), (loss, ref)

    # Ragged shape exercising the in-kernel tail masking path.
    inputs_r = jax.random.normal(k3, (2, 3, 7, 5), dtype=jnp.float32)
    targets_r = (jax.random.uniform(k4, (2, 3, 7, 5)) > 0.5).astype(jnp.float32)

    loss_r = jax.block_until_ready(iou_loss(inputs_r, targets_r))
    ref_r = jax.block_until_ready(_iou_loss_ref(inputs_r, targets_r))
    assert jnp.allclose(loss_r, ref_r, rtol=1e-5, atol=1e-5), (loss_r, ref_r)

    print("KERNEL_OK")
</pallas_src>

<mosaic_0001>
module attributes {stable_mosaic.version = 11 : i64} {
  func.func @_iou_kernel(%arg0: i32, %arg1: i32, %arg2: memref<1xi32, #tpu.memory_space<smem>>, %arg3: memref<16x128xf32, #tpu.memory_space<vmem>>, %arg4: memref<16x128xf32, #tpu.memory_space<vmem>>, %arg5: memref<1x8x128xf32, #tpu.memory_space<vmem>>, %arg6: memref<1x8x128xf32, #tpu.memory_space<vmem>>, %arg7: memref<16x128xf32, #tpu.memory_space<vmem>>, %arg8: memref<16x128xf32, #tpu.memory_space<vmem>>) attributes {dimension_semantics = [#tpu.dimension_semantics<parallel>, #tpu.dimension_semantics<arbitrary>], iteration_bounds = array<i64: 2, 1>, scalar_prefetch = 1 : i64, scratch_operands = 2 : i64, tpu.core_type = #tpu.core_type<tc>, window_params = [{transform_indices = @transform_0, window_bounds = array<i64: 16, 128>}, {transform_indices = @transform_1, window_bounds = array<i64: 16, 128>}, {transform_indices = @transform_2, window_bounds = array<i64: 1, 8, 128>}, {transform_indices = @transform_3, window_bounds = array<i64: 1, 8, 128>}]} {
    %c0_i32 = arith.constant 0 : i32
    %0 = arith.cmpi eq, %arg1, %c0_i32 : i32
    %1 = arith.extui %0 : i1 to i32
    %c0_i32_0 = arith.constant 0 : i32
    %2 = arith.cmpi ne, %1, %c0_i32_0 : i32
    scf.if %2 {
      %cst_10 = arith.constant 0.000000e+00 : f32
      %26 = vector.broadcast %cst_10 : f32 to vector<16x128xf32>
      %c0_11 = arith.constant 0 : index
      %c0_12 = arith.constant 0 : index
      %27 = vector.load %arg7[%c0_11, %c0_12] : memref<16x128xf32, #tpu.memory_space<vmem>>, vector<16x128xf32>
      tpu.vector_store %arg7[%c0_11, %c0_12], %26 {strides = array<i32>} : memref<16x128xf32, #tpu.memory_space<vmem>>, vector<16x128xf32>,
      %cst_13 = arith.constant 0.000000e+00 : f32
      %28 = vector.broadcast %cst_13 : f32 to vector<16x128xf32>
      %c0_14 = arith.constant 0 : index
      %c0_15 = arith.constant 0 : index
      %29 = vector.load %arg8[%c0_14, %c0_15] : memref<16x128xf32, #tpu.memory_space<vmem>>, vector<16x128xf32>
      tpu.vector_store %arg8[%c0_14, %c0_15], %28 {strides = array<i32>} : memref<16x128xf32, #tpu.memory_space<vmem>>, vector<16x128xf32>,
    } else {
    }
    %c0 = arith.constant 0 : index
    %c0_1 = arith.constant 0 : index
    %3 = vector.load %arg3[%c0, %c0_1] : memref<16x128xf32, #tpu.memory_space<vmem>>, vector<16x128xf32>
    %4 = arith.negf %3 : vector<16x128xf32>
    %5 = math.exp %4 : vector<16x128xf32>
    %cst = arith.constant 1.000000e+00 : f32
    %6 = vector.broadcast %cst : f32 to vector<16x128xf32>
    %7 = arith.addf %6, %5 : vector<16x128xf32>
    %8 = arith.divf %6, %7 : vector<16x128xf32>
    %c0_2 = arith.constant 0 : index
    %c0_3 = arith.constant 0 : index
    %9 = vector.load %arg4[%c0_2, %c0_3] : memref<16x128xf32, #tpu.memory_space<vmem>>, vector<16x128xf32>
    %10 = arith.mulf %8, %9 : vector<16x128xf32>
    %11 = arith.addf %8, %9 : vector<16x128xf32>
    %c1_i32 = arith.constant 1 : i32
    %12 = arith.muli %arg0, %c1_i32 : i32
    %13 = arith.addi %12, %arg1 : i32
    %c2048_i32 = arith.constant 2048 : i32
    %14 = arith.muli %13, %c2048_i32 : i32
    %c0_4 = arith.constant 0 : index
    %15 = memref.load %arg2[%c0_4] : memref<1xi32, #tpu.memory_space<smem>>
    %c2048_i32_5 = arith.constant 2048 : i32
    %16 = arith.addi %14, %c2048_i32_5 : i32
    %17 = arith.cmpi sle, %16, %15 : i32
    %18 = arith.extui %17 : i1 to i32
    %c0_i32_6 = arith.constant 0 : i32
    %19 = arith.cmpi ne, %18, %c0_i32_6 : i32
    scf.if %19 {
      %c0_10 = arith.constant 0 : index
      %c0_11 = arith.constant 0 : index
      %26 = vector.load %arg7[%c0_10, %c0_11] : memref<16x128xf32, #tpu.memory_space<vmem>>, vector<16x128xf32>
      %27 = arith.addf %26, %10 : vector<16x128xf32>
      %c0_12 = arith.constant 0 : index
      %c0_13 = arith.constant 0 : index
      %28 = vector.load %arg7[%c0_12, %c0_13] : memref<16x128xf32, #tpu.memory_space<vmem>>, vector<16x128xf32>
      tpu.vector_store %arg7[%c0_12, %c0_13], %27 {strides = array<i32>} : memref<16x128xf32, #tpu.memory_space<vmem>>, vector<16x128xf32>,
      %c0_14 = arith.constant 0 : index
      %c0_15 = arith.constant 0 : index
      %29 = vector.load %arg8[%c0_14, %c0_15] : memref<16x128xf32, #tpu.memory_space<vmem>>, vector<16x128xf32>
      %30 = arith.addf %29, %11 : vector<16x128xf32>
      %c0_16 = arith.constant 0 : index
      %c0_17 = arith.constant 0 : index
      %31 = vector.load %arg8[%c0_16, %c0_17] : memref<16x128xf32, #tpu.memory_space<vmem>>, vector<16x128xf32>
      tpu.vector_store %arg8[%c0_16, %c0_17], %30 {strides = array<i32>} : memref<16x128xf32, #tpu.memory_space<vmem>>, vector<16x128xf32>,
    } else {
    }
    %true = arith.constant true
    %20 = arith.xori %17, %true : i1
    %21 = arith.extui %20 : i1 to i32
    %c0_i32_7 = arith.constant 0 : i32
    %22 = arith.cmpi ne, %21, %c0_i32_7 : i32
    scf.if %22 {
      %26 = tpu.iota {dimensions = array<i32: 0>} : vector<16x128xi32>
      %27 = tpu.iota {dimensions = array<i32: 1>} : vector<16x128xi32>
      %c128_i32 = arith.constant 128 : i32
      %28 = vector.broadcast %c128_i32 : i32 to vector<16x128xi32>
      %29 = arith.muli %26, %28 : vector<16x128xi32>
      %30 = vector.broadcast %14 : i32 to vector<16x128xi32>
      %31 = arith.addi %30, %29 : vector<16x128xi32>
      %32 = arith.addi %31, %27 : vector<16x128xi32>
      %33 = vector.broadcast %15 : i32 to vector<16x128xi32>
      %34 = arith.cmpi slt, %32, %33 : vector<16x128xi32>
      %c0_10 = arith.constant 0 : index
      %c0_11 = arith.constant 0 : index
      %35 = vector.load %arg7[%c0_10, %c0_11] : memref<16x128xf32, #tpu.memory_space<vmem>>, vector<16x128xf32>
      %cst_12 = arith.constant 0.000000e+00 : f32
      %36 = vector.broadcast %cst_12 : f32 to vector<16x128xf32>
      %37 = arith.select %34, %10, %36 : vector<16x128xi1>, vector<16x128xf32>
      %38 = arith.addf %35, %37 : vector<16x128xf32>
      %c0_13 = arith.constant 0 : index
      %c0_14 = arith.constant 0 : index
      %39 = vector.load %arg7[%c0_13, %c0_14] : memref<16x128xf32, #tpu.memory_space<vmem>>, vector<16x128xf32>
      tpu.vector_store %arg7[%c0_13, %c0_14], %38 {strides = array<i32>} : memref<16x128xf32, #tpu.memory_space<vmem>>, vector<16x128xf32>,
      %c0_15 = arith.constant 0 : index
      %c0_16 = arith.constant 0 : index
      %40 = vector.load %arg8[%c0_15, %c0_16] : memref<16x128xf32, #tpu.memory_space<vmem>>, vector<16x128xf32>
      %cst_17 = arith.constant 0.000000e+00 : f32
      %41 = vector.broadcast %cst_17 : f32 to vector<16x128xf32>
      %42 = arith.select %34, %11, %41 : vector<16x128xi1>, vector<16x128xf32>
      %43 = arith.addf %40, %42 : vector<16x128xf32>
      %c0_18 = arith.constant 0 : index
      %c0_19 = arith.constant 0 : index
      %44 = vector.load %arg8[%c0_18, %c0_19] : memref<16x128xf32, #tpu.memory_space<vmem>>, vector<16x128xf32>
      tpu.vector_store %arg8[%c0_18, %c0_19], %43 {strides = array<i32>} : memref<16x128xf32, #tpu.memory_space<vmem>>, vector<16x128xf32>,
    } else {
    }
    %c0_i32_8 = arith.constant 0 : i32
    %23 = arith.cmpi eq, %arg1, %c0_i32_8 : i32
    %24 = arith.extui %23 : i1 to i32
    %c0_i32_9 = arith.constant 0 : i32
    %25 = arith.cmpi ne, %24, %c0_i32_9 : i32
    scf.if %25 {
      %c0_10 = arith.constant 0 : index
      %c0_11 = arith.constant 0 : index
      %26 = vector.load %arg7[%c0_10, %c0_11] : memref<16x128xf32, #tpu.memory_space<vmem>>, vector<16x128xf32>
      %27 = vector.shape_cast %26 : vector<16x128xf32> to vector<1x16x128xf32>
      %cst_12 = arith.constant dense<0.000000e+00> : vector<1xf32>
      %28 = vector.multi_reduction <add>, %27, %cst_12 [1, 2] : vector<1x16x128xf32> to vector<1xf32>
      %29 = vector.shape_cast %28 : vector<1xf32> to vector<1x1x1xf32>
      %30 = vector.extract %29[0, 0, 0] : f32 from vector<1x1x1xf32>
      %31 = vector.broadcast %30 : f32 to vector<1x8x128xf32>
      %c0_13 = arith.constant 0 : index
      %c0_14 = arith.constant 0 : index
      %c0_15 = arith.constant 0 : index
      %32 = vector.load %arg5[%c0_13, %c0_14, %c0_15] : memref<1x8x128xf32, #tpu.memory_space<vmem>>, vector<1x8x128xf32>
      tpu.vector_store %arg5[%c0_13, %c0_14, %c0_15], %31 {strides = array<i32>} : memref<1x8x128xf32, #tpu.memory_space<vmem>>, vector<1x8x128xf32>,
      %c0_16 = arith.constant 0 : index
      %c0_17 = arith.constant 0 : index
      %33 = vector.load %arg8[%c0_16, %c0_17] : memref<16x128xf32, #tpu.memory_space<vmem>>, vector<16x128xf32>
      %34 = vector.shape_cast %33 : vector<16x128xf32> to vector<1x16x128xf32>
      %cst_18 = arith.constant dense<0.000000e+00> : vector<1xf32>
      %35 = vector.multi_reduction <add>, %34, %cst_18 [1, 2] : vector<1x16x128xf32> to vector<1xf32>
      %36 = vector.shape_cast %35 : vector<1xf32> to vector<1x1x1xf32>
      %37 = vector.extract %36[0, 0, 0] : f32 from vector<1x1x1xf32>
      %38 = vector.broadcast %37 : f32 to vector<1x8x128xf32>
      %c0_19 = arith.constant 0 : index
      %c0_20 = arith.constant 0 : index
      %c0_21 = arith.constant 0 : index
      %39 = vector.load %arg6[%c0_19, %c0_20, %c0_21] : memref<1x8x128xf32, #tpu.memory_space<vmem>>, vector<1x8x128xf32>
      tpu.vector_store %arg6[%c0_19, %c0_20, %c0_21], %38 {strides = array<i32>} : memref<1x8x128xf32, #tpu.memory_space<vmem>>, vector<1x8x128xf32>,
    } else {
    }
    return
  }
  func.func @transform_0(%arg0: i32, %arg1: i32, %arg2: memref<1xi32, #tpu.memory_space<smem>>) -> (i32, i32) {
    %c1_i32 = arith.constant 1 : i32
    %0 = arith.muli %arg0, %c1_i32 : i32
    %1 = arith.addi %0, %arg1 : i32
    %c0_i32 = arith.constant 0 : i32
    %2 = arith.minsi %1, %c0_i32 : i32
    %c0_i32_0 = arith.constant 0 : i32
    %c0_i32_1 = arith.constant 0 : i32
    return %2, %c0_i32_0 : i32, i32
  }
  func.func @transform_1(%arg0: i32, %arg1: i32, %arg2: memref<1xi32, #tpu.memory_space<smem>>) -> (i32, i32) {
    %c1_i32 = arith.constant 1 : i32
    %0 = arith.muli %arg0, %c1_i32 : i32
    %1 = arith.addi %0, %arg1 : i32
    %c0_i32 = arith.constant 0 : i32
    %2 = arith.minsi %1, %c0_i32 : i32
    %c0_i32_0 = arith.constant 0 : i32
    %c0_i32_1 = arith.constant 0 : i32
    return %2, %c0_i32_0 : i32, i32
  }
  func.func @transform_2(%arg0: i32, %arg1: i32, %arg2: memref<1xi32, #tpu.memory_space<smem>>) -> (i32, i32, i32) {
    %c0_i32 = arith.constant 0 : i32
    %c0_i32_0 = arith.constant 0 : i32
    %c0_i32_1 = arith.constant 0 : i32
    return %arg0, %c0_i32, %c0_i32_0 : i32, i32, i32
  }
  func.func @transform_3(%arg0: i32, %arg1: i32, %arg2: memref<1xi32, #tpu.memory_space<smem>>) -> (i32, i32, i32) {
    %c0_i32 = arith.constant 0 : i32
    %c0_i32_0 = arith.constant 0 : i32
    %c0_i32_1 = arith.constant 0 : i32
    return %arg0, %c0_i32, %c0_i32_0 : i32, i32, i32
  }
}

</mosaic_0001>

<llo_original>
// kernel: tpu_custom_call.1
$region0: #{tpu_custom_call.1}
  #allocation0 [shape = 'u32[]', space=smem, size = 0x4, offset = 0x4, fixed_abs, tag = 'smem constant byte address 0x4 - core index']
  #allocation1 [shape = 'u32[72,128]{1,0:T(1,128)}', space=vmem, size = 0x9000, scoped, tag = 'internal scratch']
  #allocation2 [shape = 'f32[16,128]{1,0:T(8,128)}', space=vmem, size = 0x2000, scoped, tag = 'scratch operand']
  #allocation3 [shape = 'f32[16,128]{1,0:T(8,128)}', space=vmem, size = 0x2000, scoped, tag = 'scratch operand']
  #allocation4 [shape = 's32[1]{0}', space=sflag, size = 0x4, scoped, tag = 'scoped memory for tpu_custom_call.1']
  #allocation5 [shape = 's32[1]{0:T(128)S(6)}', space=smem, size = 0x200, scoped, tag = 'prefetched SMEM operand 0']
  %s0 = inlined_call_operand.<no memory space> [shape: s32[1], index: 0, kind: input, shape index: {}]
  %s1 = inlined_call_operand.hbm [shape: f32[16,128], index: 1, kind: input, shape index: {}]
  %s2 = inlined_call_operand.hbm [shape: f32[16,128], index: 2, kind: input, shape index: {}]
  %s3 = inlined_call_operand.hbm [shape: f32[2,8,128], index: 3, kind: output, shape index: {0}]
  %s4 = inlined_call_operand.hbm [shape: f32[2,8,128], index: 4, kind: output, shape index: {1}]
  %5 = xla_tuple %s3, %s4
  %s6 = sld [smem:[#allocation0]]
  $region73: #{tpu_custom_call.1} parent=0
    _
  %s8 = ssub.s32 1, %s6
  %s9 = scalar_select 0, %s8, %s6
  %10 = sst [smem:[#allocation5]] %s0
  $region1: #{tpu_custom_call.1} parent=0
    #allocation6 [shape = 'u8[16384]{0}', space=vmem, size = 0x4000, scoped, tag = 'input window, operand 1']
    #allocation7 [shape = 's32[2]{0}', space=sflag, size = 0x8, scoped, tag = 'scoped memory for tpu_custom_call.1']
    #allocation8 [shape = 's32[2]{0}', space=sflag, size = 0x8, scoped, tag = 'scoped memory for tpu_custom_call.1']
    #allocation9 [shape = 'u8[16384]{0}', space=vmem, size = 0x4000, scoped, tag = 'input window, operand 2']
    #allocation10 [shape = 's32[2]{0}', space=sflag, size = 0x8, scoped, tag = 'scoped memory for tpu_custom_call.1']
    #allocation11 [shape = 'u8[8192]{0}', space=vmem, size = 0x2000, scoped, tag = 'output window, operand 0']
    #allocation12 [shape = 'u8[8192]{0}', space=vmem, size = 0x2000, scoped, tag = 'output window, operand 1']
    #allocation13 [shape = 's32[2]{0}', space=sflag, size = 0x8, scoped, tag = 'scoped memory for tpu_custom_call.1']
    %11 = vsyncpa [#allocation7], 0
    %s12 = scalar_lea.sflag [#allocation7], 1
    %13 = vsyncpa %s12, 0
    %14 = vsyncpa [#allocation10], 0
    %s15 = scalar_lea.sflag [#allocation10], 1
    %16 = vsyncpa %s15, 0
    %17 = vsyncpa [#allocation8], 0
    %s18 = scalar_lea.sflag [#allocation8], 1
    %19 = vsyncpa %s18, 0
    %20 = vsyncpa [#allocation13], 0
    %s21 = scalar_lea.sflag [#allocation13], 1
    %22 = vsyncpa %s21, 0
    loop: start=0, step=1, limit=4
    $region2: #{tpu_custom_call.1} parent=1 // loop_pre_header
      _
    $region3: #{tpu_custom_call.1} parent=1 // loop_header
      %s24 = sphi 0, %s28
      %p25 = scmp.ge.s32.totalorder %s24, 4
      %s31 = sphi 0, %s43
      %s32 = sphi 0, %s39
      %s33 = sphi 0, %s31
      %s34 = sphi 0, %s32
      %s35 = sphi 0, %s33
      %s36 = sphi 0, %s34
      %s52 = sphi 0, %s54
      %s55 = sphi 0, %s52
      %s56 = sphi 0, %s55
      %s72 = sphi 0, %s56
      %s84 = sphi 0, %s86
      %s87 = sphi 0, %s84
      %s88 = sphi 0, %s87
      %s104 = sphi 0, %s88
      %s110 = sphi 0, %s112
      %s113 = sphi 0, %s110
      %s114 = sphi 0, %s113
      %s130 = sphi 0, %s114
      %s136 = sphi 0, %s138
      %s139 = sphi 0, %s136
      %s140 = sphi 0, %s139
      %s156 = sphi 0, %s140
    $region4: #{tpu_custom_call.1} parent=1 // loop_header_branch
      %27 = sbr.rel (%p25) target = $region8
    $region5: #{tpu_custom_call.1} parent=1 // loop_body
      %s29 = ssub.s32 %s24, 1
      %s30 = ssub.s32 %s24, 2
      %s37 = sadd.s32 1, %s32
      %p38 = scmp.ge.s32.totalorder %s37, 1
      %s39 = scalar_select %p38, 0, %s37
      %s40 = sadd.s32 1, %s31
      %s41 = scalar_select %p38, %s40, %s31
      %p42 = scmp.ge.s32.totalorder %s41, 2
      %s43 = scalar_select %p42, 0, %s41
      %s44 = sadd.s32 %s31, %s32
      %p45 = scmp.lt.s32.totalorder %s44, 0
      %s46 = scalar_select %p45, %s44, 0
      %s47 = sadd.s32 %s43, %s39
      %p48 = scmp.lt.s32.totalorder %s47, 0
      %s49 = scalar_select %p48, %s47, 0
      %s50 = ssub.s32 %s46, %s49
      %p51 = scmp.eq.s32.totalorder %s50, 0
      %s53 = sadd.s32 %s52, 1
      %s54 = scalar_select %p51, %s52, %s53
      %p57 = pneg %p51
      %p58 = scmp.eq.s32.totalorder %s24, 1
      %p59 = por %p57, %p58
      %p60 = scmp.ne.s32.totalorder %s52, %s55
      %p61 = scmp.eq.s32.totalorder %s24, 0
      %p62 = por %p60, %p61
      %p63 = scmp.ne.s32.totalorder %s52, %s55
      %p64 = scmp.eq.s32.totalorder %s29, 1
      %p65 = por %p63, %p64
      %p66 = scmp.ne.s32.totalorder %s55, %s56
      %p67 = scmp.eq.s32.totalorder %s29, 0
      %p68 = por %p66, %p67
      %p69 = scmp.ne.s32.totalorder %s55, %s56
      %p70 = scmp.eq.s32.totalorder %s30, 1
      %p71 = por %p69, %p70
      %p73 = scmp.ne.s32.totalorder %s56, %s72
      %p74 = scmp.eq.s32.totalorder %s30, 0
      %p75 = por %p73, %p74
      %s76 = sadd.s32 %s31, %s32
      %p77 = scmp.lt.s32.totalorder %s76, 0
      %s78 = scalar_select %p77, %s76, 0
      %s79 = sadd.s32 %s43, %s39
      %p80 = scmp.lt.s32.totalorder %s79, 0
      %s81 = scalar_select %p80, %s79, 0
      %s82 = ssub.s32 %s78, %s81
      %p83 = scmp.eq.s32.totalorder %s82, 0
      %s85 = sadd.s32 %s84, 1
      %s86 = scalar_select %p83, %s84, %s85
      %p89 = pneg %p83
      %p90 = scmp.eq.s32.totalorder %s24, 1
      %p91 = por %p89, %p90
      %p92 = scmp.ne.s32.totalorder %s84, %s87
      %p93 = scmp.eq.s32.totalorder %s24, 0
      %p94 = por %p92, %p93
      %p95 = scmp.ne.s32.totalorder %s84, %s87
      %p96 = scmp.eq.s32.totalorder %s29, 1
      %p97 = por %p95, %p96
      %p98 = scmp.ne.s32.totalorder %s87, %s88
      %p99 = scmp.eq.s32.totalorder %s29, 0
      %p100 = por %p98, %p99
      %p101 = scmp.ne.s32.totalorder %s87, %s88
      %p102 = scmp.eq.s32.totalorder %s30, 1
      %p103 = por %p101, %p102
      %p105 = scmp.ne.s32.totalorder %s88, %s104
      %p106 = scmp.eq.s32.totalorder %s30, 0
      %p107 = por %p105, %p106
      %s108 = ssub.s32 %s31, %s43
      %p109 = scmp.eq.s32.totalorder %s108, 0
      %s111 = sadd.s32 %s110, 1
      %s112 = scalar_select %p109, %s110, %s111
      %p115 = pneg %p109
      %p116 = scmp.eq.s32.totalorder %s24, 1
      %p117 = por %p115, %p116
      %p118 = scmp.ne.s32.totalorder %s110, %s113
      %p119 = scmp.eq.s32.totalorder %s24, 0
      %p120 = por %p118, %p119
      %p121 = scmp.ne.s32.totalorder %s110, %s113
      %p122 = scmp.eq.s32.totalorder %s29, 1
      %p123 = por %p121, %p122
      %p124 = scmp.ne.s32.totalorder %s113, %s114
      %p125 = scmp.eq.s32.totalorder %s29, 0
      %p126 = por %p124, %p125
      %p127 = scmp.ne.s32.totalorder %s113, %s114
      %p128 = scmp.eq.s32.totalorder %s30, 1
      %p129 = por %p127, %p128
      %p131 = scmp.ne.s32.totalorder %s114, %s130
      %p132 = scmp.eq.s32.totalorder %s30, 0
      %p133 = por %p131, %p132
      %s134 = ssub.s32 %s31, %s43
      %p135 = scmp.eq.s32.totalorder %s134, 0
      %s137 = sadd.s32 %s136, 1
      %s138 = scalar_select %p135, %s136, %s137
      %p141 = pneg %p135
      %p142 = scmp.eq.s32.totalorder %s24, 1
      %p143 = por %p141, %p142
      %p144 = scmp.ne.s32.totalorder %s136, %s139
      %p145 = scmp.eq.s32.totalorder %s24, 0
      %p146 = por %p144, %p145
      %p147 = scmp.ne.s32.totalorder %s136, %s139
      %p148 = scmp.eq.s32.totalorder %s29, 1
      %p149 = por %p147, %p148
      %p150 = scmp.ne.s32.totalorder %s139, %s140
      %p151 = scmp.eq.s32.totalorder %s29, 0
      %p152 = por %p150, %p151
      %p153 = scmp.ne.s32.totalorder %s139, %s140
      %p154 = scmp.eq.s32.totalorder %s30, 1
      %p155 = por %p153, %p154
      %p157 = scmp.ne.s32.totalorder %s140, %s156
      %p158 = scmp.eq.s32.totalorder %s30, 0
      %p159 = por %p157, %p158
      %p160 = scmp.le.s32.totalorder 1, %s24
      %p161 = scmp.lt.s32.totalorder %s24, 3
      %p162 = pnand %p160, %p161
      %p163 = pneg %p162
      // Predicated region
      $region9: #{tpu_custom_call.1} parent=5 // pred_check
        _
      $region10: #{tpu_custom_call.1} parent=5 // pred_check_branch
        %165 = sbr.rel (%p162) target = $region12
      $region11: #{tpu_custom_call.1} parent=5 // pred_region
        %s166 = ssub.s32 %s24, 1
      $region12: #{tpu_custom_call.1} parent=5 // pred_fallthru
        _
      %p167 = scmp.lt.s32.totalorder %s24, 2
      // Predicated region
      $region13: #{tpu_custom_call.1} parent=5 // pred_check
        %p168 = pneg %p167
      $region14: #{tpu_custom_call.1} parent=5 // pred_check_branch
        %170 = sbr.rel (%p168) target = $region16
      $region15: #{tpu_custom_call.1} parent=5 // pred_region
        // Predicated region
        $region17: #{tpu_custom_call.1} parent=15 // pred_check
          %p171 = pneg %p62
        $region18: #{tpu_custom_call.1} parent=15 // pred_check_branch
          %173 = sbr.rel (%p171) target = $region20
        $region19: #{tpu_custom_call.1} parent=15 // pred_region
          %s174 = sand.u32 %s52, 1
          %s175 = scalar_lea.sflag [#allocation7], %s174
          %s176 = sand.u32 %s52, 1
          %s177 = smul.addr %s176, 16
          %s178 = scalar_lea.vmem [#allocation6], %s177
          %s179 = sadd.s32 %s31, %s32
          %p180 = scmp.lt.s32.totalorder %s179, 0
          %s181 = scalar_select %p180, %s179, 0
          %s182 = smul.u32 2, %s181
          %184 = vsyncadd %s175, 0
          %s185 = smul.addr %s182, 8
          %s186 = scalar_lea.hbm %s1, %s185
          %s187 = sshll.u32 %s186, 4
          %s188 = int_to_ptr.hbm [resolvable:$true] %s187
          %s189 = sshll.u32 %s178, 4
          %s190 = int_to_ptr.vmem [resolvable:$true] %s189
          %195 = dma.hbm_to_vmem [thread:$0]  %s188, 256, %s190, %s175, 128, 128, 8
        $region20: #{tpu_custom_call.1} parent=15 // pred_fallthru
          _
        // Predicated region
        $region21: #{tpu_custom_call.1} parent=15 // pred_check
          %p196 = pneg %p94
        $region22: #{tpu_custom_call.1} parent=15 // pred_check_branch
          %198 = sbr.rel (%p196) target = $region24
        $region23: #{tpu_custom_call.1} parent=15 // pred_region
          %s199 = sand.u32 %s84, 1
          %s200 = scalar_lea.sflag [#allocation10], %s199
          %s201 = sand.u32 %s84, 1
          %s202 = smul.addr %s201, 16
          %s203 = scalar_lea.vmem [#allocation9], %s202
          %s204 = sadd.s32 %s31, %s32
          %p205 = scmp.lt.s32.totalorder %s204, 0
          %s206 = scalar_select %p205, %s204, 0
          %s207 = smul.u32 2, %s206
          %209 = vsyncadd %s200, 0
          %s210 = smul.addr %s207, 8
          %s211 = scalar_lea.hbm %s2, %s210
          %s212 = sshll.u32 %s211, 4
          %s213 = int_to_ptr.hbm [resolvable:$true] %s212
          %s214 = sshll.u32 %s203, 4
          %s215 = int_to_ptr.vmem [resolvable:$true] %s214
          %220 = dma.hbm_to_vmem [thread:$0]  %s213, 256, %s215, %s200, 128, 128, 8
        $region24: #{tpu_custom_call.1} parent=15 // pred_fallthru
          _
      $region16: #{tpu_custom_call.1} parent=5 // pred_fallthru
        _
      %p221 = scmp.le.s32.totalorder 1, %s24
      %p222 = scmp.lt.s32.totalorder %s24, 3
      %p223 = pnand %p221, %p222
      %p224 = pneg %p223
      // Predicated region
      $region25: #{tpu_custom_call.1} parent=5 // pred_check
        _
      $region26: #{tpu_custom_call.1} parent=5 // pred_check_branch
        %226 = sbr.rel (%p223) target = $region28
      $region27: #{tpu_custom_call.1} parent=5 // pred_region
        %s227 = ssub.s32 %s24, 1
        %s228 = sand.u32 %s55, 1
        %s229 = scalar_lea.sflag [#allocation7], %s228
        %s230 = sand.u32 %s55, 1
        %s231 = smul.addr %s230, 16
        %s232 = scalar_lea.vmem [#allocation6], %s231
        // Predicated region
        $region29: #{tpu_custom_call.1} parent=27 // pred_check
          %p233 = pneg %p68
        $region30: #{tpu_custom_call.1} parent=27 // pred_check_branch
          %235 = sbr.rel (%p233) target = $region32
        $region31: #{tpu_custom_call.1} parent=27 // pred_region
          %237 = dma.done %s229, 256
        $region32: #{tpu_custom_call.1} parent=27 // pred_fallthru
          _
        %s238 = sand.u32 %s87, 1
        %s239 = scalar_lea.sflag [#allocation10], %s238
        %s240 = sand.u32 %s87, 1
        %s241 = smul.addr %s240, 16
        %s242 = scalar_lea.vmem [#allocation9], %s241
        // Predicated region
        $region33: #{tpu_custom_call.1} parent=27 // pred_check
          %p243 = pneg %p100
        $region34: #{tpu_custom_call.1} parent=27 // pred_check_branch
          %245 = sbr.rel (%p243) target = $region36
        $region35: #{tpu_custom_call.1} parent=27 // pred_region
          %247 = dma.done %s239, 256
        $region36: #{tpu_custom_call.1} parent=27 // pred_fallthru
          _
        %s248 = sand.u32 %s55, 1
        %s249 = scalar_lea.sflag [#allocation7], %s248
        %s250 = sand.u32 %s55, 1
        %s251 = smul.addr %s250, 16
        %s252 = scalar_lea.vmem [#allocation6], %s251
        %p253 = pneg %p68
        %p254 = pneg %p65
        %s255 = sand.u32 %s87, 1
        %s256 = scalar_lea.sflag [#allocation10], %s255
        %s257 = sand.u32 %s87, 1
        %s258 = smul.addr %s257, 16
        %s259 = scalar_lea.vmem [#allocation9], %s258
        %p260 = pneg %p100
        %p261 = pneg %p97
        %p262 = pneg %p126
        %p263 = pneg %p123
        %s264 = sand.u32 %s113, 1
        %s265 = scalar_lea.sflag [#allocation8], %s264
        %s266 = sand.u32 %s113, 1
        %s267 = smul.addr %s266, 8
        %s268 = scalar_lea.vmem [#allocation11], %s267
        %p269 = pneg %p152
        %p270 = pneg %p149
        %s271 = sand.u32 %s139, 1
        %s272 = scalar_lea.sflag [#allocation13], %s271
        %s273 = sand.u32 %s139, 1
        %s274 = smul.addr %s273, 8
        %s275 = scalar_lea.vmem [#allocation12], %s274
        %s276 = sadd.s32 %s33, %s34
        %p277 = scmp.lt.s32.totalorder %s276, 0
        %s278 = scalar_select %p277, %s276, 0
        %s279 = smul.u32 2, %s278
        %s280 = sadd.s32 %s33, %s34
        %p281 = scmp.lt.s32.totalorder %s280, 0
        %s282 = scalar_select %p281, %s280, 0
        %s283 = smul.u32 2, %s282
        %p284 = scmp.eq.s32.totalorder %s34, 0
        // Predicated region
        $region37: #{tpu_custom_call.1} parent=27 // pred_check
          %p285 = pneg %p284
        $region38: #{tpu_custom_call.1} parent=27 // pred_check_branch
          %287 = sbr.rel (%p285) target = $region40
        $region39: #{tpu_custom_call.1} parent=27 // pred_region
          %288 = vst [vmem:[#allocation2] sm:$0xff] 0.0
          %289 = vst [vmem:[#allocation2 + $0x8] sm:$0xff] 0.0
          %290 = vst [vmem:[#allocation3] sm:$0xff] 0.0
          %291 = vst [vmem:[#allocation3 + $0x8] sm:$0xff] 0.0
        $region40: #{tpu_custom_call.1} parent=27 // pred_fallthru
          _
        %v292 = vld [vmem:[%s232] sm:$0xff]
        %v293 = vld [vmem:[%s232 + $0x8] sm:$0xff]
        %v294 = vxor.u32 %v292, 2147483648
        %v295 = vxor.u32 %v293, 2147483648
        %v296 = vmul.f32 %v294, 1.442695
        %v297 = vpow.pop %v296
        %v298 = vmul.f32 %v295, 1.442695
        %v299 = vpow.pop %v298
        %v300 = vadd.f32 %v297, 1.0
        %v301 = vadd.f32 %v299, 1.0
        %v302 = vrcp.pop %v300
        %v303 = vmul.f32 %v300, %v302
        %v304 = vsub.f32 1.0, %v303
        %v305 = vmul.f32 %v302, %v304
        %v306 = vadd.f32 %v302, %v305
        %vm307 = vweird.f32 %v300
        %vm308 = vweird.f32 %v302
        %vm309 = vmor %vm307, %vm308
        %v310 = vsel %vm309, %v302, %v306
        %v311 = vand.u32 2147483647, %v300
        %vm312 = vcmp.eq.f32.partialorder %v311, 8.507059e+37
        %v313 = vand.u32 %v300, 2147483648
        %v314 = vor.u32 1.1754944e-38, %v313
        %v315 = vsel %vm312, %v314, %v310
        %v316 = vmul.f32 1.0, %v315
        %v317 = vrcp.pop %v301
        %v318 = vmul.f32 %v301, %v317
        %v319 = vsub.f32 1.0, %v318
        %v320 = vmul.f32 %v317, %v319
        %v321 = vadd.f32 %v317, %v320
        %vm322 = vweird.f32 %v301
        %vm323 = vweird.f32 %v317
        %vm324 = vmor %vm322, %vm323
        %v325 = vsel %vm324, %v317, %v321
        %v326 = vand.u32 2147483647, %v301
        %vm327 = vcmp.eq.f32.partialorder %v326, 8.507059e+37
        %v328 = vand.u32 %v301, 2147483648
        %v329 = vor.u32 1.1754944e-38, %v328
        %v330 = vsel %vm327, %v329, %v325
        %v331 = vmul.f32 1.0, %v330
        %v332 = vld [vmem:[%s242] sm:$0xff]
        %v333 = vld [vmem:[%s242 + $0x8] sm:$0xff]
        %v334 = vmul.f32 %v316, %v332
        %v335 = vmul.f32 %v331, %v333
        %v336 = vadd.f32 %v316, %v332
        %v337 = vadd.f32 %v331, %v333
        %s338 = sadd.s32 %s33, %s34
        %s339 = smul.u32 %s338, 2048
        %s340 = sld [smem:[#allocation5]]
        %s341 = sadd.s32 %s339, 2048
        %p342 = scmp.le.s32.totalorder %s341, %s340
        // Predicated region
        $region41: #{tpu_custom_call.1} parent=27 // pred_check
          %p343 = pneg %p342
        $region42: #{tpu_custom_call.1} parent=27 // pred_check_branch
          %345 = sbr.rel (%p343) target = $region44
        $region43: #{tpu_custom_call.1} parent=27 // pred_region
          %v346 = vld [vmem:[#allocation2] sm:$0xff]
          %v347 = vld [vmem:[#allocation2 + $0x8] sm:$0xff]
          %v348 = vadd.f32 %v346, %v334
          %v349 = vadd.f32 %v347, %v335
          %350 = vst [vmem:[#allocation2] sm:$0xff] %v348
          %351 = vst [vmem:[#allocation2 + $0x8] sm:$0xff] %v349
          %v352 = vld [vmem:[#allocation3] sm:$0xff]
          %v353 = vld [vmem:[#allocation3 + $0x8] sm:$0xff]
          %v354 = vadd.f32 %v352, %v336
          %v355 = vadd.f32 %v353, %v337
          %356 = vst [vmem:[#allocation3] sm:$0xff] %v354
          %357 = vst [vmem:[#allocation3 + $0x8] sm:$0xff] %v355
        $region44: #{tpu_custom_call.1} parent=27 // pred_fallthru
          _
        %p358 = scmp.gt.s32.totalorder %s341, %s340
        // Predicated region
        $region45: #{tpu_custom_call.1} parent=27 // pred_check
          %p359 = pneg %p358
        $region46: #{tpu_custom_call.1} parent=27 // pred_check_branch
          %361 = sbr.rel (%p359) target = $region48
        $region47: #{tpu_custom_call.1} parent=27 // pred_region
          %v362 = vlaneseq
          %v363 = vshrl.u32 %v362, 7
          %v364 = vadd.s32 %v363, 8
          %v365 = vlaneseq
          %v366 = vand.u32 %v365, 127
          %v367 = vmul.u32 %v363, 128
          %v368 = vmul.u32 %v364, 128
          %v369 = vstv %s339
          %v370 = vadd.s32 %v369, %v367
          %v371 = vadd.s32 %v369, %v368
          %v372 = vadd.s32 %v370, %v366
          %v373 = vadd.s32 %v371, %v366
          %v374 = vstv %s340
          %vm375 = vcmp.lt.s32.totalorder %v372, %v374
          %vm376 = vcmp.lt.s32.totalorder %v373, %v374
          %v377 = vld [vmem:[#allocation2] sm:$0xff]
          %v378 = vld [vmem:[#allocation2 + $0x8] sm:$0xff]
          %v379 = vsel %vm375, %v334, 0.0
          %v380 = vsel %vm376, %v335, 0.0
          %v381 = vadd.f32 %v377, %v379
          %v382 = vadd.f32 %v378, %v380
          %383 = vst [vmem:[#allocation2] sm:$0xff] %v381
          %384 = vst [vmem:[#allocation2 + $0x8] sm:$0xff] %v382
          %v385 = vld [vmem:[#allocation3] sm:$0xff]
          %v386 = vld [vmem:[#allocation3 + $0x8] sm:$0xff]
          %v387 = vsel %vm375, %v336, 0.0
          %v388 = vsel %vm376, %v337, 0.0
          %v389 = vadd.f32 %v385, %v387
          %v390 = vadd.f32 %v386, %v388
          %391 = vst [vmem:[#allocation3] sm:$0xff] %v389
          %392 = vst [vmem:[#allocation3 + $0x8] sm:$0xff] %v390
        $region48: #{tpu_custom_call.1} parent=27 // pred_fallthru
          _
        // Predicated region
        $region49: #{tpu_custom_call.1} parent=27 // pred_check
          %p393 = pneg %p284
        $region50: #{tpu_custom_call.1} parent=27 // pred_check_branch
          %395 = sbr.rel (%p393) target = $region52
        $region51: #{tpu_custom_call.1} parent=27 // pred_region
          %v396 = vld [vmem:[#allocation2] sm:$0xff]
          %v397 = vld [vmem:[#allocation2 + $0x8] sm:$0xff]
          %v398 = vadd.f32 %v396, %v397
          %399 = vadd.xlane.f32.xlu0 %v398
          %v400 = vpop.xlane.xlu0 %399
          %v401 = vrot.slane %v400, 4
          %v402 = vadd.f32 %v400, %v401
          %v403 = vrot.slane %v402, 2
          %v404 = vadd.f32 %v402, %v403
          %v405 = vrot.slane %v404, 1
          %v406 = vadd.f32 %v404, %v405
          %s407 = vtos %v406
          %v408 = vstv %s407
          %409 = vst [vmem:[%s268] sm:$0xff] %v408
          %v410 = vld [vmem:[#allocation3] sm:$0xff]
          %v411 = vld [vmem:[#allocation3 + $0x8] sm:$0xff]
          %v412 = vadd.f32 %v410, %v411
          %413 = vadd.xlane.f32.xlu0 %v412
          %v414 = vpop.xlane.xlu0 %413
          %v415 = vrot.slane %v414, 4
          %v416 = vadd.f32 %v414, %v415
          %v417 = vrot.slane %v416, 2
          %v418 = vadd.f32 %v416, %v417
          %v419 = vrot.slane %v418, 1
          %v420 = vadd.f32 %v418, %v419
          %s421 = vtos %v420
          %v422 = vstv %s421
          %423 = vst [vmem:[%s275] sm:$0xff] %v422
        $region52: #{tpu_custom_call.1} parent=27 // pred_fallthru
          _
        %s424 = sand.u32 %s113, 1
        %s425 = scalar_lea.sflag [#allocation8], %s424
        %s426 = sand.u32 %s113, 1
        %s427 = smul.addr %s426, 8
        %s428 = scalar_lea.vmem [#allocation11], %s427
        %s429 = sand.u32 %s139, 1
        %s430 = scalar_lea.sflag [#allocation13], %s429
        %s431 = sand.u32 %s139, 1
        %s432 = smul.addr %s431, 8
        %s433 = scalar_lea.vmem [#allocation12], %s432
        // Predicated region
        $region53: #{tpu_custom_call.1} parent=27 // pred_check
          %p434 = pneg %p123
        $region54: #{tpu_custom_call.1} parent=27 // pred_check_branch
          %436 = sbr.rel (%p434) target = $region56
        $region55: #{tpu_custom_call.1} parent=27 // pred_region
          %438 = vsyncadd %s425, 0
          %s439 = smul.addr %s33, 8
          %s440 = scalar_lea.hbm %s3, %s439
          %s442 = sshll.u32 %s428, 4
          %s443 = int_to_ptr.vmem [resolvable:$true] %s442
          %s444 = sshll.u32 %s440, 4
          %s445 = int_to_ptr.hbm [resolvable:$true] %s444
          %447 = dma.vmem_to_hbm [thread:$0]  %s443, 128, %s445, %s425
        $region56: #{tpu_custom_call.1} parent=27 // pred_fallthru
          _
        // Predicated region
        $region57: #{tpu_custom_call.1} parent=27 // pred_check
          %p448 = pneg %p149
        $region58: #{tpu_custom_call.1} parent=27 // pred_check_branch
          %450 = sbr.rel (%p448) target = $region60
        $region59: #{tpu_custom_call.1} parent=27 // pred_region
          %452 = vsyncadd %s430, 0
          %s453 = smul.addr %s33, 8
          %s454 = scalar_lea.hbm %s4, %s453
          %s456 = sshll.u32 %s433, 4
          %s457 = int_to_ptr.vmem [resolvable:$true] %s456
          %s458 = sshll.u32 %s454, 4
          %s459 = int_to_ptr.hbm [resolvable:$true] %s458
          %461 = dma.vmem_to_hbm [thread:$0]  %s457, 128, %s459, %s430
        $region60: #{tpu_custom_call.1} parent=27 // pred_fallthru
          _
      $region28: #{tpu_custom_call.1} parent=5 // pred_fallthru
        _
      %p462 = scmp.le.s32.totalorder 2, %s24
      // Predicated region
      $region61: #{tpu_custom_call.1} parent=5 // pred_check
        %p463 = pneg %p462
      $region62: #{tpu_custom_call.1} parent=5 // pred_check_branch
        %465 = sbr.rel (%p463) target = $region64
      $region63: #{tpu_custom_call.1} parent=5 // pred_region
        %s466 = ssub.s32 %s24, 2
        // Predicated region
        $region65: #{tpu_custom_call.1} parent=63 // pred_check
          %p467 = pneg %p129
        $region66: #{tpu_custom_call.1} parent=63 // pred_check_branch
          %469 = sbr.rel (%p467) target = $region68
        $region67: #{tpu_custom_call.1} parent=63 // pred_region
          %s470 = sand.u32 %s114, 1
          %s471 = scalar_lea.sflag [#allocation8], %s470
          %s472 = sand.u32 %s114, 1
          %s473 = smul.addr %s472, 8
          %s474 = scalar_lea.vmem [#allocation11], %s473
          %476 = dma.done %s471, 128
        $region68: #{tpu_custom_call.1} parent=63 // pred_fallthru
          _
        // Predicated region
        $region69: #{tpu_custom_call.1} parent=63 // pred_check
          %p477 = pneg %p155
        $region70: #{tpu_custom_call.1} parent=63 // pred_check_branch
          %479 = sbr.rel (%p477) target = $region72
        $region71: #{tpu_custom_call.1} parent=63 // pred_region
          %s480 = sand.u32 %s140, 1
          %s481 = scalar_lea.sflag [#allocation13], %s480
          %s482 = sand.u32 %s140, 1
          %s483 = smul.addr %s482, 8
          %s484 = scalar_lea.vmem [#allocation12], %s483
          %486 = dma.done %s481, 128
        $region72: #{tpu_custom_call.1} parent=63 // pred_fallthru
          _
      $region64: #{tpu_custom_call.1} parent=5 // pred_fallthru
        _
    $region6: #{tpu_custom_call.1} parent=1 // loop_footer
      %s28 = sadd.s32 1, %s24
    $region7: #{tpu_custom_call.1} parent=1 // loop_footer_branch
      %23 = sbr.rel target = $region3
    $region8: #{tpu_custom_call.1} parent=1 // loop_exit
      _
    %487 = vsyncpa [#allocation7], 1
    %s488 = scalar_lea.sflag [#allocation7], 1
    %489 = vsyncpa %s488, 1
    %490 = vsyncpa [#allocation10], 1
    %s491 = scalar_lea.sflag [#allocation10], 1
    %492 = vsyncpa %s491, 1
    %493 = vsyncpa [#allocation8], 1
    %s494 = scalar_lea.sflag [#allocation8], 1
    %495 = vsyncpa %s494, 1
    %496 = vsyncpa [#allocation13], 1
    %s497 = scalar_lea.sflag [#allocation13], 1
    %498 = vsyncpa %s497, 1

</llo_original>
